<compile_context>
chip_gen: v5e
topology: v5e:2x2
jax: 0.10.0
libtpu: 0.0.40
codegen_flags: <defaults>
</compile_context>

<pallas_src>
import functools

import jax
import jax.numpy as jnp
from jax.experimental import pallas as pl
from jax.experimental.pallas import tpu as pltpu


def _round_up(x, m):
    return ((x + m - 1) // m) * m


def _supports_pipeline_mode():
    # Construction-time probe: older jax versions lack pipeline_mode/Buffered.
    try:
        pl.BlockSpec((8, 128), lambda i: (0, 0), pipeline_mode=pl.Buffered(1))
        return True
    except Exception:
        return False


_HAS_BUFFERED = _supports_pipeline_mode()


def _resident_spec(shape):
    """BlockSpec for an operand that stays resident across all grid steps."""
    index_map = lambda i: (0,) * len(shape)
    if _HAS_BUFFERED:
        return pl.BlockSpec(shape, index_map, pipeline_mode=pl.Buffered(1))
    return pl.BlockSpec(shape, index_map)


def _decoder_kernel(x_ref, *rest, n_pads):
    # x_ref : (tm, K0_pad)          activations (bf16)
    # rest  : (wt_0 .. wt_{L-1}, b_packed_ref, o_ref)
    #   wt_i      : (Ki_pad, Ni_pad)      pre-transposed, zero-padded (bf16)
    #   b_packed  : (L, max_N_pad)        zero-padded biases (f32)
    #   o_ref     : (tm, N_last_pad)      output (f32)
    n_layers = len(n_pads)
    b_ref = rest[n_layers]
    o_ref = rest[n_layers + 1]

    compute_dtype = x_ref.dtype
    h = x_ref[...]
    for i, n_pad in enumerate(n_pads):
        wt = rest[i][...]
        if wt.dtype != compute_dtype:  # guard only; prepared weights match.
            wt = wt.astype(compute_dtype)
        # MXU matmul, f32 accumulation; epilogue in f32.
        y = jnp.dot(h, wt, preferred_element_type=jnp.float32)
        y = y + b_ref[i:i + 1, :n_pad]
        if i == n_layers - 1:
            # sigmoid(x) = 1 / (1 + exp(-x)); exp on EUP, exact reciprocal.
            o_ref[...] = pl.reciprocal(1.0 + jnp.exp(-y),
                                       approx=False).astype(o_ref.dtype)
        else:
            h = jnp.maximum(y, 0.0).astype(compute_dtype)


def init_decoder_params(layers, key):
    """Mirror of Decoder.__init__: Linear(layers[-i-1], layers[-i-2]) for
    i in range(len(layers)-1). PyTorch-style uniform init. Stored as torch-
    layout f32 (out_features, in_features) — the canonical params."""
    params = []
    for i in range(len(layers) - 1):
        in_f = layers[-i - 1]
        out_f = layers[-i - 2]
        key, kw, kb = jax.random.split(key, 3)
        bound = 1.0 / jnp.sqrt(jnp.float32(in_f))
        w = jax.random.uniform(kw, (out_f, in_f), jnp.float32, -bound, bound)
        b = jax.random.uniform(kb, (out_f,), jnp.float32, -bound, bound)
        params.append((w, b))
    return params


def prepare_decoder_params(params, matmul_dtype=jnp.bfloat16):
    """One-time prep for the fused kernel: transpose to (in, out), zero-pad
    both feature dims to multiples of 128 (lane-dense), cast weights to the
    matmul dtype (bf16). Biases are packed into one f32 (L, max_N_pad)."""
    wts = []
    n_pads = []
    for w, _ in params:
        out_f, in_f = w.shape
        k_pad = _round_up(in_f, 128)
        n_pad = _round_up(out_f, 128)
        wt = jnp.zeros((k_pad, n_pad), matmul_dtype)
        wt = wt.at[:in_f, :out_f].set(w.T.astype(matmul_dtype))
        assert wt.dtype == matmul_dtype
        wts.append(wt)
        n_pads.append(n_pad)

    max_n_pad = max(n_pads)
    b_packed = jnp.zeros((len(params), max_n_pad), jnp.float32)
    for i, (_, b) in enumerate(params):
        b_packed = b_packed.at[i, :b.shape[0]].set(b.astype(jnp.float32))

    return {"weights": tuple(wts), "bias": b_packed}


@functools.partial(jax.jit, static_argnames=("out_features",))
def decoder_forward(prepared, x, *, out_features):
    """Fused decoder forward. `prepared` comes from prepare_decoder_params."""
    wts = prepared["weights"]
    b_packed = prepared["bias"]
    n_layers = len(wts)
    n_pads = tuple(int(wt.shape[1]) for wt in wts)
    k_pad = int(wts[0].shape[0])
    n_last_pad = n_pads[-1]
    max_n_pad = max(n_pads)
    act_dtype = wts[0].dtype
    act_item = act_dtype.itemsize

    M, K = x.shape
    assert K <= k_pad

    # ---------------- VMEM budget (generation-aware) ----------------
    vmem_cap = 64 * 1024 * 1024            # conservative fallback (v7x-sized)
    try:
        vmem_cap = int(pltpu.get_tpu_info().vmem_capacity_bytes)
    except Exception:
        pass
    vmem_budget = int(0.85 * vmem_cap)      # leave compiler-scratch headroom
    headroom = 4 * 1024 * 1024

    wb_factor = 1 if _HAS_BUFFERED else 2   # resident operands single-buffered
    resident_bytes = sum(int(wt.size) * wt.dtype.itemsize for wt in wts)
    resident_bytes += int(b_packed.size) * b_packed.dtype.itemsize
    resident_bytes *= wb_factor

    # per batch-row: dbl-buffered bf16 x in + dbl-buffered f32 out + the
    # widest intermediate (f32 y plus bf16 h).
    per_row = (2 * k_pad * act_item
               + 2 * n_last_pad * 4
               + max_n_pad * (4 + act_item))
    avail = vmem_budget - resident_bytes - headroom
    tm_budget = max(8, (avail // per_row) // 8 * 8) if avail > per_row * 8 else 8
    tm_cap = int(min(1024, tm_budget))      # 512-1024 tiles hit ~85% of roofline

    # ---------------- batch (M) tiling ----------------
    m_pad0 = _round_up(max(M, 8), 8)
    if m_pad0 < 16:
        tm = m_pad0                         # too small to split
    else:
        # >= 2 grid steps: v7x megacore gets both TCs busy, DMA/compute overlap.
        tm = min(tm_cap, _round_up(pl.cdiv(m_pad0, 2), 8))
    m_pad = _round_up(m_pad0, tm)
    grid = (m_pad // tm,)

    # cast to matmul dtype in the wrapper (halves x HBM traffic / VMEM), pad.
    x = x.astype(act_dtype)
    if (m_pad, k_pad) != (M, K):
        x = jnp.pad(x, ((0, m_pad - M), (0, k_pad - K)))

    # ---------------- specs ----------------
    in_specs = [pl.BlockSpec((tm, k_pad), lambda i: (i, 0))]
    for wt in wts:
        in_specs.append(_resident_spec(tuple(int(d) for d in wt.shape)))
    in_specs.append(_resident_spec(tuple(int(d) for d in b_packed.shape)))
    out_spec = pl.BlockSpec((tm, n_last_pad), lambda i: (i, 0))

    act_bytes = tm * per_row
    vmem_need = resident_bytes + act_bytes + headroom
    vmem_limit = int(min(max(vmem_need, 8 * 1024 * 1024), vmem_budget))

    flops = 2 * m_pad * sum(int(wt.shape[0]) * int(wt.shape[1]) for wt in wts)
    bytes_accessed = (m_pad * k_pad * act_item
                      + sum(int(wt.size) * wt.dtype.itemsize for wt in wts)
                      + int(b_packed.size) * 4
                      + m_pad * n_last_pad * 4)
    cost = pl.CostEstimate(flops=flops,
                           transcendentals=m_pad * n_last_pad,
                           bytes_accessed=bytes_accessed)

    kernel = functools.partial(_decoder_kernel, n_pads=n_pads)
    out_pad = pl.pallas_call(
        kernel,
        out_shape=jax.ShapeDtypeStruct((m_pad, n_last_pad), jnp.float32),
        grid=grid,
        in_specs=in_specs,
        out_specs=out_spec,
        compiler_params=pltpu.CompilerParams(
            dimension_semantics=("parallel",),
            vmem_limit_bytes=vmem_limit,
        ),
        cost_estimate=cost,
    )(x, *wts, b_packed)

    return out_pad[:M, :out_features]


def decoder_forward_ref(params, x):
    """Pure-JAX f32 reference matching the PyTorch forward."""
    n = len(params)
    for i, (w, b) in enumerate(params):
        y = x @ w.T + b
        if i == n - 1:
            return jax.nn.sigmoid(y)
        x = jnp.maximum(y, 0.0)


if __name__ == "__main__":
    # layers = [32, 64, 128] => Linear(128->64) + ReLU, Linear(64->32) + sigmoid
    layers = [32, 64, 128]
    batch = 16

    key = jax.random.PRNGKey(0)
    key, kx = jax.random.split(key)
    params = init_decoder_params(layers, key)
    x = jax.random.normal(kx, (batch, layers[-1]), jnp.float32)

    prepared = prepare_decoder_params(params)          # one-time prep
    out = decoder_forward(prepared, x, out_features=layers[0])
    out = jax.block_until_ready(out)

    ref = decoder_forward_ref(params, x)
    assert out.shape == (batch, layers[0]), out.shape
    # bf16 matmul operands => loosened tolerance vs f32 reference.
    assert jnp.allclose(out, ref, atol=2e-2, rtol=2e-2), "mismatch vs reference"

    print("KERNEL_OK")
</pallas_src>

<mosaic_0001>
module attributes {stable_mosaic.version = 11 : i64} {
  func.func @_decoder_kernel(%arg0: i32, %arg1: memref<8x128xbf16, #tpu.memory_space<vmem>>, %arg2: memref<128x128xbf16, #tpu.memory_space<vmem>>, %arg3: memref<128x128xbf16, #tpu.memory_space<vmem>>, %arg4: memref<2x128xf32, #tpu.memory_space<vmem>>, %arg5: memref<8x128xf32, #tpu.memory_space<vmem>>) attributes {dimension_semantics = [#tpu.dimension_semantics<parallel>], iteration_bounds = array<i64: 2>, scalar_prefetch = 0 : i64, scratch_operands = 0 : i64, tpu.core_type = #tpu.core_type<tc>, window_params = [{transform_indices = @transform_0, window_bounds = array<i64: 8, 128>}, {pipeline_mode = #tpu.pipeline_mode<synchronous>, transform_indices = @transform_1, window_bounds = array<i64: 128, 128>}, {pipeline_mode = #tpu.pipeline_mode<synchronous>, transform_indices = @transform_2, window_bounds = array<i64: 128, 128>}, {pipeline_mode = #tpu.pipeline_mode<synchronous>, transform_indices = @transform_3, window_bounds = array<i64: 2, 128>}, {transform_indices = @transform_4, window_bounds = array<i64: 8, 128>}]} {
    %c0 = arith.constant 0 : index
    %c0_0 = arith.constant 0 : index
    %0 = vector.load %arg1[%c0, %c0_0] : memref<8x128xbf16, #tpu.memory_space<vmem>>, vector<8x128xbf16>
    %c0_1 = arith.constant 0 : index
    %c0_2 = arith.constant 0 : index
    %1 = vector.load %arg2[%c0_1, %c0_2] : memref<128x128xbf16, #tpu.memory_space<vmem>>, vector<128x128xbf16>
    %cst = arith.constant dense<0.000000e+00> : vector<8x128xf32>
    %2 = tpu.matmul %0, %1, %cst {dimension_numbers = #tpu.dot_dimension_numbers<[1], [0], [0], [1], [0, 0, 1, 1], [], []>} : vector<8x128xbf16>, vector<128x128xbf16>, vector<8x128xf32> -> vector<8x128xf32>
    %c0_3 = arith.constant 0 : index
    %c0_4 = arith.constant 0 : index
    %3 = vector.load %arg4[%c0_3, %c0_4] : memref<2x128xf32, #tpu.memory_space<vmem>>, vector<1x128xf32>
    %4 = vector.broadcast %3 : vector<1x128xf32> to vector<8x128xf32>
    %5 = arith.addf %2, %4 : vector<8x128xf32>
    %cst_5 = arith.constant 0.000000e+00 : f32
    %6 = vector.broadcast %cst_5 : f32 to vector<8x128xf32>
    %7 = arith.maximumf %5, %6 : vector<8x128xf32>
    %8 = arith.truncf %7 : vector<8x128xf32> to vector<8x128xbf16>
    %c0_6 = arith.constant 0 : index
    %c0_7 = arith.constant 0 : index
    %9 = vector.load %arg3[%c0_6, %c0_7] : memref<128x128xbf16, #tpu.memory_space<vmem>>, vector<128x128xbf16>
    %cst_8 = arith.constant dense<0.000000e+00> : vector<8x128xf32>
    %10 = tpu.matmul %8, %9, %cst_8 {dimension_numbers = #tpu.dot_dimension_numbers<[1], [0], [0], [1], [0, 0, 1, 1], [], []>} : vector<8x128xbf16>, vector<128x128xbf16>, vector<8x128xf32> -> vector<8x128xf32>
    %c1 = arith.constant 1 : index
    %c0_9 = arith.constant 0 : index
    %11 = vector.load %arg4[%c1, %c0_9] : memref<2x128xf32, #tpu.memory_space<vmem>>, vector<1x128xf32>
    %12 = vector.broadcast %11 : vector<1x128xf32> to vector<8x128xf32>
    %13 = arith.addf %10, %12 : vector<8x128xf32>
    %cst_10 = arith.constant 0.000000e+00 : f32
    %14 = vector.broadcast %cst_10 : f32 to vector<8x128xf32>
    %15 = arith.subf %14, %13 : vector<8x128xf32>
    %16 = math.exp %15 : vector<8x128xf32>
    %cst_11 = arith.constant 1.000000e+00 : f32
    %17 = vector.broadcast %cst_11 : f32 to vector<8x128xf32>
    %18 = arith.addf %17, %16 : vector<8x128xf32>
    %19 = tpu.reciprocal %18 : vector<8x128xf32> -> vector<8x128xf32>
    %c0_12 = arith.constant 0 : index
    %c0_13 = arith.constant 0 : index
    %20 = vector.load %arg5[%c0_12, %c0_13] : memref<8x128xf32, #tpu.memory_space<vmem>>, vector<8x128xf32>
    tpu.vector_store %arg5[%c0_12, %c0_13], %19 {strides = array<i32>} : memref<8x128xf32, #tpu.memory_space<vmem>>, vector<8x128xf32>,
    return
  }
  func.func @transform_0(%arg0: i32) -> (i32, i32) {
    %c0_i32 = arith.constant 0 : i32
    %c0_i32_0 = arith.constant 0 : i32
    return %arg0, %c0_i32 : i32, i32
  }
  func.func @transform_1(%arg0: i32) -> (i32, i32) {
    %c0_i32 = arith.constant 0 : i32
    %c0_i32_0 = arith.constant 0 : i32
    %c0_i32_1 = arith.constant 0 : i32
    return %c0_i32, %c0_i32_0 : i32, i32
  }
  func.func @transform_2(%arg0: i32) -> (i32, i32) {
    %c0_i32 = arith.constant 0 : i32
    %c0_i32_0 = arith.constant 0 : i32
    %c0_i32_1 = arith.constant 0 : i32
    return %c0_i32, %c0_i32_0 : i32, i32
  }
  func.func @transform_3(%arg0: i32) -> (i32, i32) {
    %c0_i32 = arith.constant 0 : i32
    %c0_i32_0 = arith.constant 0 : i32
    %c0_i32_1 = arith.constant 0 : i32
    return %c0_i32, %c0_i32_0 : i32, i32
  }
  func.func @transform_4(%arg0: i32) -> (i32, i32) {
    %c0_i32 = arith.constant 0 : i32
    %c0_i32_0 = arith.constant 0 : i32
    return %arg0, %c0_i32 : i32, i32
  }
}

</mosaic_0001>

<llo_original>
// kernel: decoder_forward.1
$region0: #{decoder_forward.1}
  #allocation0 [shape = 'u32[]', space=smem, size = 0x4, offset = 0x4, fixed_abs, tag = 'smem constant byte address 0x4 - core index']
  #allocation1 [shape = 'u32[72,128]{1,0:T(1,128)}', space=vmem, size = 0x9000, scoped, tag = 'internal scratch']
  %s0 = inlined_call_operand.vmem [shape: bf16[16,128], index: 0, kind: input, shape index: {}]
  %s1 = inlined_call_operand.hbm [shape: bf16[128,128], index: 1, kind: input, shape index: {}]
  %s2 = inlined_call_operand.hbm [shape: bf16[128,128], index: 2, kind: input, shape index: {}]
  %s3 = inlined_call_operand.vmem [shape: f32[2,128], index: 3, kind: input, shape index: {}]
  %s4 = inlined_call_operand.hbm [shape: f32[16,128], index: 4, kind: output, shape index: {}]
  %s5 = sld [smem:[#allocation0]]
  $region57: #{decoder_forward.1} parent=0
    _
  %s7 = ssub.s32 1, %s5
  %s8 = scalar_select 0, %s7, %s5
  $region1: #{decoder_forward.1} parent=0
    #allocation2 [shape = 'u8[32768]{0}', space=vmem, size = 0x8000, scoped, tag = 'input window, operand 1, single buffered']
    #allocation3 [shape = 's32[2]{0}', space=sflag, size = 0x8, scoped, tag = 'scoped memory for decoder_forward.1']
    #allocation4 [shape = 's32[2]{0}', space=sflag, size = 0x8, scoped, tag = 'scoped memory for decoder_forward.1']
    #allocation5 [shape = 'u8[32768]{0}', space=vmem, size = 0x8000, scoped, tag = 'input window, operand 2, single buffered']
    #allocation6 [shape = 's32[1]{0}', space=sflag, size = 0x4, scoped, tag = 'scoped memory for decoder_forward.1']
    #allocation7 [shape = 'u8[8192]{0}', space=vmem, size = 0x2000, scoped, tag = 'output window, operand 0']
    %9 = vsyncpa [#allocation3], 0
    %10 = vsyncpa [#allocation6], 0
    %11 = vsyncpa [#allocation4], 0
    %s12 = scalar_lea.sflag [#allocation4], 1
    %13 = vsyncpa %s12, 0
    loop: start=0, step=1, limit=4
    $region2: #{decoder_forward.1} parent=1 // loop_pre_header
      _
    $region3: #{decoder_forward.1} parent=1 // loop_header
      %s15 = sphi 0, %s19
      %p16 = scmp.ge.s32.totalorder %s15, 4
      %s25 = sphi 0, %s27
      %s28 = sphi 0, %s25
      %s29 = sphi 0, %s28
      %s45 = sphi 0, %s29
      %s49 = sphi 0, %s49
      %s51 = sphi 0, %s49
      %s52 = sphi 0, %s51
      %s66 = sphi 0, %s52
      %s70 = sphi 0, %s70
      %s72 = sphi 0, %s70
      %s73 = sphi 0, %s72
      %s87 = sphi 0, %s73
      %s91 = sphi 0, %s91
      %s93 = sphi 0, %s91
      %s94 = sphi 0, %s93
      %s108 = sphi 0, %s94
      %s114 = sphi 0, %s116
      %s117 = sphi 0, %s114
      %s118 = sphi 0, %s117
      %s134 = sphi 0, %s118
    $region4: #{decoder_forward.1} parent=1 // loop_header_branch
      %18 = sbr.rel (%p16) target = $region8
    $region5: #{decoder_forward.1} parent=1 // loop_body
      %s20 = ssub.s32 %s15, 1
      %s21 = ssub.s32 %s15, 2
      %s22 = sadd.s32 %s15, 1
      %s23 = ssub.s32 %s15, %s22
      %p24 = scmp.eq.s32.totalorder %s23, 0
      %s26 = sadd.s32 %s25, 1
      %s27 = scalar_select %p24, %s25, %s26
      %p30 = pneg %p24
      %p31 = scmp.eq.s32.totalorder %s15, 1
      %p32 = por %p30, %p31
      %p33 = scmp.ne.s32.totalorder %s25, %s28
      %p34 = scmp.eq.s32.totalorder %s15, 0
      %p35 = por %p33, %p34
      %p36 = scmp.ne.s32.totalorder %s25, %s28
      %p37 = scmp.eq.s32.totalorder %s20, 1
      %p38 = por %p36, %p37
      %p39 = scmp.ne.s32.totalorder %s28, %s29
      %p40 = scmp.eq.s32.totalorder %s20, 0
      %p41 = por %p39, %p40
      %p42 = scmp.ne.s32.totalorder %s28, %s29
      %p43 = scmp.eq.s32.totalorder %s21, 1
      %p44 = por %p42, %p43
      %p46 = scmp.ne.s32.totalorder %s29, %s45
      %p47 = scmp.eq.s32.totalorder %s21, 0
      %p48 = por %p46, %p47
      %s50 = sadd.s32 %s49, 1
      %p53 = scmp.eq.s32.totalorder %s15, 1
      %p54 = scmp.ne.s32.totalorder %s49, %s51
      %p55 = scmp.eq.s32.totalorder %s15, 0
      %p56 = por %p54, %p55
      %p57 = scmp.ne.s32.totalorder %s49, %s51
      %p58 = scmp.eq.s32.totalorder %s20, 1
      %p59 = por %p57, %p58
      %p60 = scmp.ne.s32.totalorder %s51, %s52
      %p61 = scmp.eq.s32.totalorder %s20, 0
      %p62 = por %p60, %p61
      %p63 = scmp.ne.s32.totalorder %s51, %s52
      %p64 = scmp.eq.s32.totalorder %s21, 1
      %p65 = por %p63, %p64
      %p67 = scmp.ne.s32.totalorder %s52, %s66
      %p68 = scmp.eq.s32.totalorder %s21, 0
      %p69 = por %p67, %p68
      %s71 = sadd.s32 %s70, 1
      %p74 = scmp.eq.s32.totalorder %s15, 1
      %p75 = scmp.ne.s32.totalorder %s70, %s72
      %p76 = scmp.eq.s32.totalorder %s15, 0
      %p77 = por %p75, %p76
      %p78 = scmp.ne.s32.totalorder %s70, %s72
      %p79 = scmp.eq.s32.totalorder %s20, 1
      %p80 = por %p78, %p79
      %p81 = scmp.ne.s32.totalorder %s72, %s73
      %p82 = scmp.eq.s32.totalorder %s20, 0
      %p83 = por %p81, %p82
      %p84 = scmp.ne.s32.totalorder %s72, %s73
      %p85 = scmp.eq.s32.totalorder %s21, 1
      %p86 = por %p84, %p85
      %p88 = scmp.ne.s32.totalorder %s73, %s87
      %p89 = scmp.eq.s32.totalorder %s21, 0
      %p90 = por %p88, %p89
      %s92 = sadd.s32 %s91, 1
      %p95 = scmp.eq.s32.totalorder %s15, 1
      %p96 = scmp.ne.s32.totalorder %s91, %s93
      %p97 = scmp.eq.s32.totalorder %s15, 0
      %p98 = por %p96, %p97
      %p99 = scmp.ne.s32.totalorder %s91, %s93
      %p100 = scmp.eq.s32.totalorder %s20, 1
      %p101 = por %p99, %p100
      %p102 = scmp.ne.s32.totalorder %s93, %s94
      %p103 = scmp.eq.s32.totalorder %s20, 0
      %p104 = por %p102, %p103
      %p105 = scmp.ne.s32.totalorder %s93, %s94
      %p106 = scmp.eq.s32.totalorder %s21, 1
      %p107 = por %p105, %p106
      %p109 = scmp.ne.s32.totalorder %s94, %s108
      %p110 = scmp.eq.s32.totalorder %s21, 0
      %p111 = por %p109, %p110
      %s112 = ssub.s32 %s15, %s22
      %p113 = scmp.eq.s32.totalorder %s112, 0
      %s115 = sadd.s32 %s114, 1
      %s116 = scalar_select %p113, %s114, %s115
      %p119 = pneg %p113
      %p120 = scmp.eq.s32.totalorder %s15, 1
      %p121 = por %p119, %p120
      %p122 = scmp.ne.s32.totalorder %s114, %s117
      %p123 = scmp.eq.s32.totalorder %s15, 0
      %p124 = por %p122, %p123
      %p125 = scmp.ne.s32.totalorder %s114, %s117
      %p126 = scmp.eq.s32.totalorder %s20, 1
      %p127 = por %p125, %p126
      %p128 = scmp.ne.s32.totalorder %s117, %s118
      %p129 = scmp.eq.s32.totalorder %s20, 0
      %p130 = por %p128, %p129
      %p131 = scmp.ne.s32.totalorder %s117, %s118
      %p132 = scmp.eq.s32.totalorder %s21, 1
      %p133 = por %p131, %p132
      %p135 = scmp.ne.s32.totalorder %s118, %s134
      %p136 = scmp.eq.s32.totalorder %s21, 0
      %p137 = por %p135, %p136
      %p138 = scmp.le.s32.totalorder 1, %s15
      %p139 = scmp.lt.s32.totalorder %s15, 3
      %p140 = pnand %p138, %p139
      %p141 = pneg %p140
      // Predicated region
      $region9: #{decoder_forward.1} parent=5 // pred_check
        _
      $region10: #{decoder_forward.1} parent=5 // pred_check_branch
        %143 = sbr.rel (%p140) target = $region12
      $region11: #{decoder_forward.1} parent=5 // pred_region
        %s144 = ssub.s32 %s15, 1
        // Predicated region
        $region13: #{decoder_forward.1} parent=11 // pred_check
          %p145 = pneg %p62
        $region14: #{decoder_forward.1} parent=11 // pred_check_branch
          %147 = sbr.rel (%p145) target = $region16
        $region15: #{decoder_forward.1} parent=11 // pred_region
          %149 = vsyncadd [#allocation3], 0
          %s150 = sshll.u32 %s1, 4
          %s151 = int_to_ptr.hbm [resolvable:$true] %s150
          %s152 = sshll.u32 [#allocation2], 4
          %s153 = int_to_ptr.vmem [resolvable:$true] %s152
          %158 = dma.hbm_to_vmem [thread:$0]  %s151, 1024, %s153, [#allocation3], 64, 64, 4
        $region16: #{decoder_forward.1} parent=11 // pred_fallthru
          _
        // Predicated region
        $region17: #{decoder_forward.1} parent=11 // pred_check
          %p159 = pneg %p83
        $region18: #{decoder_forward.1} parent=11 // pred_check_branch
          %161 = sbr.rel (%p159) target = $region20
        $region19: #{decoder_forward.1} parent=11 // pred_region
          %163 = vsyncadd [#allocation6], 0
          %s164 = sshll.u32 %s2, 4
          %s165 = int_to_ptr.hbm [resolvable:$true] %s164
          %s166 = sshll.u32 [#allocation5], 4
          %s167 = int_to_ptr.vmem [resolvable:$true] %s166
          %172 = dma.hbm_to_vmem [thread:$0]  %s165, 1024, %s167, [#allocation6], 64, 64, 4
        $region20: #{decoder_forward.1} parent=11 // pred_fallthru
          _
        // Predicated region
        $region21: #{decoder_forward.1} parent=11 // pred_check
          %p173 = pneg %p104
        $region22: #{decoder_forward.1} parent=11 // pred_check_branch
          %175 = sbr.rel (%p173) target = $region24
        $region23: #{decoder_forward.1} parent=11 // pred_region
          _
        $region24: #{decoder_forward.1} parent=11 // pred_fallthru
          _
      $region12: #{decoder_forward.1} parent=5 // pred_fallthru
        _
      %p176 = scmp.lt.s32.totalorder %s15, 2
      // Predicated region
      $region25: #{decoder_forward.1} parent=5 // pred_check
        %p177 = pneg %p176
      $region26: #{decoder_forward.1} parent=5 // pred_check_branch
        %179 = sbr.rel (%p177) target = $region28
      $region27: #{decoder_forward.1} parent=5 // pred_region
        // Predicated region
        $region29: #{decoder_forward.1} parent=27 // pred_check
          %p180 = pneg %p35
        $region30: #{decoder_forward.1} parent=27 // pred_check_branch
          %182 = sbr.rel (%p180) target = $region32
        $region31: #{decoder_forward.1} parent=27 // pred_region
          %p183 = scmp.lt.s32.totalorder %s15, 1
          %s184 = scalar_select %p183, %s15, 1
          %s185 = smul.addr %s184, 4
          %s186 = scalar_lea.vmem %s0, %s185
        $region32: #{decoder_forward.1} parent=27 // pred_fallthru
          _
      $region28: #{decoder_forward.1} parent=5 // pred_fallthru
        _
      %p187 = scmp.le.s32.totalorder 1, %s15
      %p188 = scmp.lt.s32.totalorder %s15, 3
      %p189 = pnand %p187, %p188
      %p190 = pneg %p189
      // Predicated region
      $region33: #{decoder_forward.1} parent=5 // pred_check
        _
      $region34: #{decoder_forward.1} parent=5 // pred_check_branch
        %192 = sbr.rel (%p189) target = $region36
      $region35: #{decoder_forward.1} parent=5 // pred_region
        %s193 = ssub.s32 %s15, 1
        // Predicated region
        $region37: #{decoder_forward.1} parent=35 // pred_check
          %p194 = pneg %p62
        $region38: #{decoder_forward.1} parent=35 // pred_check_branch
          %196 = sbr.rel (%p194) target = $region40
        $region39: #{decoder_forward.1} parent=35 // pred_region
          %198 = dma.done [#allocation3], 1024
        $region40: #{decoder_forward.1} parent=35 // pred_fallthru
          _
        // Predicated region
        $region41: #{decoder_forward.1} parent=35 // pred_check
          %p199 = pneg %p83
        $region42: #{decoder_forward.1} parent=35 // pred_check_branch
          %201 = sbr.rel (%p199) target = $region44
        $region43: #{decoder_forward.1} parent=35 // pred_region
          %203 = dma.done [#allocation6], 1024
        $region44: #{decoder_forward.1} parent=35 // pred_fallthru
          _
        %p204 = scmp.lt.s32.totalorder %s20, 1
        %s205 = scalar_select %p204, %s20, 1
        %s206 = smul.addr %s205, 4
        %s207 = scalar_lea.vmem %s0, %s206
        %p208 = pneg %p41
        %p209 = pneg %p38
        %p210 = pneg %p62
        %p211 = pneg %p59
        %p212 = pneg %p83
        %p213 = pneg %p80
        %p214 = pneg %p104
        %p215 = pneg %p101
        %p216 = pneg %p130
        %p217 = pneg %p127
        %s218 = sand.u32 %s117, 1
        %s219 = scalar_lea.sflag [#allocation4], %s218
        %s220 = sand.u32 %s117, 1
        %s221 = smul.addr %s220, 8
        %s222 = scalar_lea.vmem [#allocation7], %s221
        %p223 = scmp.lt.s32.totalorder %s20, 1
        %s224 = scalar_select %p223, %s20, 1
        %s225 = smul.addr %s224, 4
        %s226 = scalar_lea.vmem %s0, %s225
        %v227 = vld [vmem:[%s226] sm:$0xf]
        %v228 = vld [vmem:[#allocation2] sm:$0xf]
        %v229 = vld [vmem:[#allocation2 + $0x4] sm:$0xf]
        %v230 = vld [vmem:[#allocation2 + $0x8] sm:$0xf]
        %v231 = vld [vmem:[#allocation2 + $0xc] sm:$0xf]
        %v232 = vld [vmem:[#allocation2 + $0x10] sm:$0xf]
        %v233 = vld [vmem:[#allocation2 + $0x14] sm:$0xf]
        %v234 = vld [vmem:[#allocation2 + $0x18] sm:$0xf]
        %v235 = vld [vmem:[#allocation2 + $0x1c] sm:$0xf]
        %v236 = vld [vmem:[#allocation2 + $0x20] sm:$0xf]
        %v237 = vld [vmem:[#allocation2 + $0x24] sm:$0xf]
        %v238 = vld [vmem:[#allocation2 + $0x28] sm:$0xf]
        %v239 = vld [vmem:[#allocation2 + $0x2c] sm:$0xf]
        %v240 = vld [vmem:[#allocation2 + $0x30] sm:$0xf]
        %v241 = vld [vmem:[#allocation2 + $0x34] sm:$0xf]
        %v242 = vld [vmem:[#allocation2 + $0x38] sm:$0xf]
        %v243 = vld [vmem:[#allocation2 + $0x3c] sm:$0xf]
        %v244 = vld [vmem:[%s3] sm:$0x1]
        %v245 = vperm.slane %v244, 0
        %v262 = vunpack.c.l.b16 %v228
        %v263 = vunpack.c.l.b16 %v229
        %v264 = vunpack.c.l.b16 %v230
        %v265 = vunpack.c.l.b16 %v231
        %v266 = vunpack.c.l.b16 %v232
        %v267 = vunpack.c.l.b16 %v233
        %v268 = vunpack.c.l.b16 %v234
        %v269 = vunpack.c.l.b16 %v235
        %v270 = vunpack.c.l.b16 %v236
        %v271 = vunpack.c.l.b16 %v237
        %v272 = vunpack.c.l.b16 %v238
        %v273 = vunpack.c.l.b16 %v239
        %v274 = vunpack.c.l.b16 %v240
        %v275 = vunpack.c.l.b16 %v241
        %v276 = vunpack.c.l.b16 %v242
        %v277 = vunpack.c.l.b16 %v243
        %v278 = vpack.c.b16 %v263, %v262
        %v279 = vpack.c.b16 %v265, %v264
        %v280 = vpack.c.b16 %v267, %v266
        %v281 = vpack.c.b16 %v269, %v268
        %v282 = vpack.c.b16 %v271, %v270
        %v283 = vpack.c.b16 %v273, %v272
        %v284 = vpack.c.b16 %v275, %v274
        %v285 = vpack.c.b16 %v277, %v276
        %294 = vmatpush.bf16.msra.mxu0 %v285
        %295 = vmatpush.bf16.msra.mxu0 %v284
        %296 = vmatpush.bf16.msra.mxu0 %v283
        %297 = vmatpush.bf16.msra.mxu0 %v282
        %298 = vmatpush.bf16.msra.mxu0 %v281
        %299 = vmatpush.bf16.msra.mxu0 %v280
        %300 = vmatpush.bf16.msra.mxu0 %v279
        %301 = vmatpush.bf16.msra.mxu0 %v278
        %302 = vmatmul.bf16.gmra.mxu0 %v227
        %v303 = vpop.f32.mrf.mxu0
        %v304 = vadd.f32 %v245, %v303
        %v305 = vpop.f32.mrf.mxu0
        %306 = vdwg.mxu0
        %v307 = vmax.f32 %v304, 0.0
        %v308 = vpack.c.bf16 %v307, %v307
        %v309 = vld [vmem:[#allocation5] sm:$0xf]
        %v310 = vld [vmem:[#allocation5 + $0x4] sm:$0xf]
        %v311 = vld [vmem:[#allocation5 + $0x8] sm:$0xf]
        %v312 = vld [vmem:[#allocation5 + $0xc] sm:$0xf]
        %v313 = vld [vmem:[#allocation5 + $0x10] sm:$0xf]
        %v314 = vld [vmem:[#allocation5 + $0x14] sm:$0xf]
        %v315 = vld [vmem:[#allocation5 + $0x18] sm:$0xf]
        %v316 = vld [vmem:[#allocation5 + $0x1c] sm:$0xf]
        %v317 = vld [vmem:[#allocation5 + $0x20] sm:$0xf]
        %v318 = vld [vmem:[#allocation5 + $0x24] sm:$0xf]
        %v319 = vld [vmem:[#allocation5 + $0x28] sm:$0xf]
        %v320 = vld [vmem:[#allocation5 + $0x2c] sm:$0xf]
        %v321 = vld [vmem:[#allocation5 + $0x30] sm:$0xf]
        %v322 = vld [vmem:[#allocation5 + $0x34] sm:$0xf]
        %v323 = vld [vmem:[#allocation5 + $0x38] sm:$0xf]
        %v324 = vld [vmem:[#allocation5 + $0x3c] sm:$0xf]
        %v325 = vld [vmem:[%s3 + $0x1] sm:$0x1]
        %v326 = vperm.slane %v325, 0
        %v343 = vunpack.c.l.b16 %v309
        %v344 = vunpack.c.l.b16 %v310
        %v345 = vunpack.c.l.b16 %v311
        %v346 = vunpack.c.l.b16 %v312
        %v347 = vunpack.c.l.b16 %v313
        %v348 = vunpack.c.l.b16 %v314
        %v349 = vunpack.c.l.b16 %v315
        %v350 = vunpack.c.l.b16 %v316
        %v351 = vunpack.c.l.b16 %v317
        %v352 = vunpack.c.l.b16 %v318
        %v353 = vunpack.c.l.b16 %v319
        %v354 = vunpack.c.l.b16 %v320
        %v355 = vunpack.c.l.b16 %v321
        %v356 = vunpack.c.l.b16 %v322
        %v357 = vunpack.c.l.b16 %v323
        %v358 = vunpack.c.l.b16 %v324
        %v359 = vpack.c.b16 %v344, %v343
        %v360 = vpack.c.b16 %v346, %v345
        %v361 = vpack.c.b16 %v348, %v347
        %v362 = vpack.c.b16 %v350, %v349
        %v363 = vpack.c.b16 %v352, %v351
        %v364 = vpack.c.b16 %v354, %v353
        %v365 = vpack.c.b16 %v356, %v355
        %v366 = vpack.c.b16 %v358, %v357
        %375 = vmatpush.bf16.msra.mxu0 %v366
        %376 = vmatpush.bf16.msra.mxu0 %v365
        %377 = vmatpush.bf16.msra.mxu0 %v364
        %378 = vmatpush.bf16.msra.mxu0 %v363
        %379 = vmatpush.bf16.msra.mxu0 %v362
        %380 = vmatpush.bf16.msra.mxu0 %v361
        %381 = vmatpush.bf16.msra.mxu0 %v360
        %382 = vmatpush.bf16.msra.mxu0 %v359
        %383 = vmatmul.bf16.gmra.mxu0 %v308
        %v384 = vpop.f32.mrf.mxu0
        %v385 = vadd.f32 %v326, %v384
        %v386 = vpop.f32.mrf.mxu0
        %387 = vdwg.mxu0
        %v388 = vsub.f32 0.0, %v385
        %v389 = vmul.f32 %v388, 1.442695
        %v390 = vpow.pop %v389
        %v391 = vadd.f32 %v390, 1.0
        %v392 = vrcp.pop %v391
        %v393 = vmul.f32 %v391, %v392
        %v394 = vsub.f32 1.0, %v393
        %v395 = vmul.f32 %v392, %v394
        %v396 = vadd.f32 %v392, %v395
        %vm397 = vweird.f32 %v391
        %vm398 = vweird.f32 %v392
        %vm399 = vmor %vm397, %vm398
        %v400 = vsel %vm399, %v392, %v396
        %v401 = vand.u32 2147483647, %v391
        %vm402 = vcmp.eq.f32.partialorder %v401, 8.507059e+37
        %v403 = vand.u32 %v391, 2147483648
        %v404 = vor.u32 1.1754944e-38, %v403
        %v405 = vsel %vm402, %v404, %v400
        %406 = vst [vmem:[%s222] sm:$0xff] %v405
        %s407 = sand.u32 %s117, 1
        %s408 = scalar_lea.sflag [#allocation4], %s407
        %s409 = sand.u32 %s117, 1
        %s410 = smul.addr %s409, 8
        %s411 = scalar_lea.vmem [#allocation7], %s410
        // Predicated region
        $region45: #{decoder_forward.1} parent=35 // pred_check
          %p412 = pneg %p127
        $region46: #{decoder_forward.1} parent=35 // pred_check_branch
          %414 = sbr.rel (%p412) target = $region48
        $region47: #{decoder_forward.1} parent=35 // pred_region
          %416 = vsyncadd %s408, 0
          %s417 = smul.addr %s20, 8
          %s418 = scalar_lea.hbm %s4, %s417
          %s420 = sshll.u32 %s411, 4
          %s421 = int_to_ptr.vmem [resolvable:$true] %s420
          %s422 = sshll.u32 %s418, 4
          %s423 = int_to_ptr.hbm [resolvable:$true] %s422
          %425 = dma.vmem_to_hbm [thread:$0]  %s421, 128, %s423, %s408
        $region48: #{decoder_forward.1} parent=35 // pred_fallthru
          _
      $region36: #{decoder_forward.1} parent=5 // pred_fallthru
        _
      %p426 = scmp.le.s32.totalorder 2, %s15
      // Predicated region
      $region49: #{decoder_forward.1} parent=5 // pred_check
        %p427 = pneg %p426
      $region50: #{decoder_forward.1} parent=5 // pred_check_branch
        %429 = sbr.rel (%p427) target = $region52
      $region51: #{decoder_forward.1} parent=5 // pred_region
        %s430 = ssub.s32 %s15, 2
        // Predicated region
        $region53: #{decoder_forward.1} parent=51 // pred_check
          %p431 = pneg %p133
        $region54: #{decoder_forward.1} parent=51 // pred_check_branch
          %433 = sbr.rel (%p431) target = $region56
        $region55: #{decoder_forward.1} parent=51 // pred_region
          %s434 = sand.u32 %s118, 1
          %s435 = scalar_lea.sflag [#allocation4], %s434
          %s436 = sand.u32 %s118, 1
          %s437 = smul.addr %s436, 8
          %s438 = scalar_lea.vmem [#allocation7], %s437
          %440 = dma.done %s435, 128
        $region56: #{decoder_forward.1} parent=51 // pred_fallthru
          _
      $region52: #{decoder_forward.1} parent=5 // pred_fallthru
        _
    $region6: #{decoder_forward.1} parent=1 // loop_footer
      %s19 = sadd.s32 1, %s15
    $region7: #{decoder_forward.1} parent=1 // loop_footer_branch
      %14 = sbr.rel target = $region3
    $region8: #{decoder_forward.1} parent=1 // loop_exit
      _
    %441 = vsyncpa [#allocation3], 1
    %s442 = scalar_lea.sflag [#allocation3], 1
    %443 = vsyncpa %s442, 1
    %444 = vsyncpa [#allocation6], 1
    %445 = vsyncpa [#allocation4], 1
    %s446 = scalar_lea.sflag [#allocation4], 1
    %447 = vsyncpa %s446, 1

</llo_original>
